<compile_context>
chip_gen: v7x
topology: tpu7x:2x2x1
jax: 0.10.0
libtpu: 0.0.40
codegen_flags: <defaults>
</compile_context>

<pallas_src>
import functools

import jax
import jax.numpy as jnp
from jax.experimental import pallas as pl
from jax.experimental.pallas import tpu as pltpu


def _multi_interest_kernel(x_ref, bias_ref, w1_ref, w2_ref, o_ref):
    """One grid step processes BB sequences.

    x_ref:    (BB, S, E)   sequence embeddings (f32 or bf16)
    bias_ref: (BB, S)      additive mask bias: 0 (keep) / -1e9 (masked)
    w1_ref:   (E, D)
    w2_ref:   (D, KP)      K zero-padded up to a multiple of 128 lanes
    o_ref:    (BB, K*E)    lane-dense output (reshaped to (B, K, E) outside)
    """
    BB, S, E = x_ref.shape
    K = o_ref.shape[1] // E

    xb = x_ref[...]                                   # (BB, S, E)
    # Fold batch into the MXU M dimension. Merging leading dims only (last
    # dim unchanged) -> free reshape.
    xf = xb.reshape(BB * S, E)

    # H = tanh(x @ W1), M = BB*S
    h = jnp.tanh(jnp.dot(xf, w1_ref[...], preferred_element_type=jnp.float32))
    h = h.astype(w2_ref.dtype)        # no-op for f32; enables bf16 MXU path

    # scores = H @ W2 (lane-dense via padded K), then additive mask bias.
    scores = jnp.dot(h, w2_ref[...], preferred_element_type=jnp.float32)
    scores = scores.reshape(BB, S, -1)                # split leading dim: free
    scores = scores + bias_ref[...][:, :, None]

    # Softmax over the sequence axis (== F.softmax(dim=1)).
    mx = jnp.max(scores, axis=1, keepdims=True)
    e = jnp.exp(scores - mx)
    denom = jnp.sum(e, axis=1, keepdims=True)
    a = e * pl.reciprocal(denom, approx=True)         # EUP slot, ~free

    # out[b, k, :] = sum_s a[b, s, k] * x[b, s, :]
    # Unrolled over the small, static K: VPU multiply + sublane reduce.
    # Avoids per-batch (S,K)->(K,S) transposes and tiny 4-row MXU passes.
    xf32 = xb.astype(jnp.float32)
    chunks = []
    for k in range(K):
        w_k = a[:, :, k:k + 1]                        # (BB, S, 1) static slice
        chunks.append(jnp.sum(w_k * xf32, axis=1))    # (BB, E)
    out = jnp.concatenate(chunks, axis=-1)            # (BB, K*E) lane-dense
    o_ref[...] = out.astype(o_ref.dtype)


@functools.partial(jax.jit, static_argnames=("block_batch", "use_bf16_mxu"))
def multi_interest_self_attention(sequence_embeddings, W1, W2, mask=None,
                                  *, block_batch=8, use_bf16_mxu=False):
    """Pallas forward of MultiInterestSelfAttention.

    sequence_embeddings: (B, S, E) float
    W1: (E, D), W2: (D, K)
    mask: optional (B, S, 1) binary mask
    Returns: (B, K, E)
    """
    B, S, E = sequence_embeddings.shape
    D, K = W2.shape
    assert W1.shape == (E, D), "W1 must be (embedding_dim, d)"

    BB = block_batch
    if BB % 8 != 0:
        raise ValueError("block_batch must be a multiple of 8 (sublane tiling)")
    B_pad = ((B + BB - 1) // BB) * BB

    # Additive mask bias as a dense (B, S) f32 array (no lane-sparse (S,1) DMA).
    if mask is None:
        bias = jnp.zeros((B, S), dtype=jnp.float32)
    else:
        bias = -1.0e9 * (1.0 - mask.astype(jnp.float32).reshape(B, S))

    # Pad the K dimension of W2 to a lane multiple once, outside the kernel.
    KP = ((K + 127) // 128) * 128
    W1_in = W1.astype(jnp.float32)
    W2_in = jnp.pad(W2.astype(jnp.float32), ((0, 0), (0, KP - K)))
    x_in = sequence_embeddings

    if use_bf16_mxu:
        # bf16 MXU operands, f32 accumulation (loosen tolerances if comparing
        # against an f32 reference).
        x_in = x_in.astype(jnp.bfloat16)
        W1_in = W1_in.astype(jnp.bfloat16)
        W2_in = W2_in.astype(jnp.bfloat16)

    if B_pad != B:
        # Zero-padded rows produce all-zero outputs (discarded below); no NaNs.
        x_in = jnp.pad(x_in, ((0, B_pad - B), (0, 0), (0, 0)))
        bias = jnp.pad(bias, ((0, B_pad - B), (0, 0)))

    out2d = pl.pallas_call(
        _multi_interest_kernel,
        out_shape=jax.ShapeDtypeStruct((B_pad, K * E), sequence_embeddings.dtype),
        grid_spec=pltpu.PrefetchScalarGridSpec(
            num_scalar_prefetch=0,
            grid=(B_pad // BB,),
            in_specs=[
                pl.BlockSpec((BB, S, E), lambda b: (b, 0, 0)),
                pl.BlockSpec((BB, S), lambda b: (b, 0)),
                pl.BlockSpec((E, D), lambda b: (0, 0)),   # resident weights
                pl.BlockSpec((D, KP), lambda b: (0, 0)),
            ],
            out_specs=pl.BlockSpec((BB, K * E), lambda b: (b, 0)),
        ),
        compiler_params=pltpu.CompilerParams(
            dimension_semantics=("parallel",)),
    )(x_in, bias, W1_in, W2_in)

    return out2d[:B].reshape(B, K, E)


def _reference(sequence_embeddings, W1, W2, mask=None):
    """Pure-JAX mirror of the PyTorch forward (for verification)."""
    H = jnp.tanh(jnp.einsum('bse,ed->bsd', sequence_embeddings, W1))
    A = jnp.einsum('bsd,dk->bsk', H, W2)
    if mask is not None:
        A = A + (-1.0e9) * (1.0 - mask.astype(jnp.float32))
    A = jax.nn.softmax(A, axis=1)
    A = jnp.transpose(A, (0, 2, 1))
    return jnp.matmul(A, sequence_embeddings)


if __name__ == "__main__":
    # Small shapes consistent with the module:
    #   seq=8, embedding_dim=32, num_attention_heads=4, d=4*32=128.
    # B=12 with block_batch=8 exercises batch padding and a 2-step grid.
    B, S, E, K = 12, 8, 32, 4
    D = 4 * E

    key = jax.random.PRNGKey(0)
    k_x, k_m, k_w1, k_w2, k_w3 = jax.random.split(key, 5)

    x = jax.random.normal(k_x, (B, S, E), dtype=jnp.float32)
    mask = (jax.random.uniform(k_m, (B, S, 1)) > 0.3).astype(jnp.float32)

    # Parameters: torch.rand -> uniform [0, 1).
    W1 = jax.random.uniform(k_w1, (E, D), dtype=jnp.float32)
    W2 = jax.random.uniform(k_w2, (D, K), dtype=jnp.float32)
    W3 = jax.random.uniform(k_w3, (E, E), dtype=jnp.float32)  # unused in forward (parity with PyTorch)

    out = multi_interest_self_attention(x, W1, W2, mask, block_batch=8)
    out = jax.block_until_ready(out)

    ref = _reference(x, W1, W2, mask)
    assert out.shape == (B, K, E)
    assert jnp.allclose(out, ref, atol=5e-3, rtol=5e-3), "mismatch vs reference (masked)"

    # Also exercise the mask=None path.
    out_nm = jax.block_until_ready(
        multi_interest_self_attention(x, W1, W2, None, block_batch=8))
    ref_nm = _reference(x, W1, W2, None)
    assert jnp.allclose(out_nm, ref_nm, atol=5e-3, rtol=5e-3), "mismatch vs reference (no mask)"

    print("KERNEL_OK")
</pallas_src>

<mosaic_0001>
module attributes {stable_mosaic.version = 11 : i64} {
  func.func @_multi_interest_kernel(%arg0: i32, %arg1: memref<8x8x32xf32, #tpu.memory_space<vmem>>, %arg2: memref<8x8xf32, #tpu.memory_space<vmem>>, %arg3: memref<32x128xf32, #tpu.memory_space<vmem>>, %arg4: memref<128x128xf32, #tpu.memory_space<vmem>>, %arg5: memref<8x128xf32, #tpu.memory_space<vmem>>) attributes {dimension_semantics = [#tpu.dimension_semantics<parallel>], iteration_bounds = array<i64: 2>, scalar_prefetch = 0 : i64, scratch_operands = 0 : i64, tpu.core_type = #tpu.core_type<tc>, window_params = [{transform_indices = @transform_0, window_bounds = array<i64: 8, 8, 32>}, {transform_indices = @transform_1, window_bounds = array<i64: 8, 8>}, {pipeline_mode = #tpu.pipeline_mode<synchronous>, transform_indices = @transform_2, window_bounds = array<i64: 32, 128>}, {pipeline_mode = #tpu.pipeline_mode<synchronous>, transform_indices = @transform_3, window_bounds = array<i64: 128, 128>}, {transform_indices = @transform_4, window_bounds = array<i64: 8, 128>}]} {
    %c0 = arith.constant 0 : index
    %c0_0 = arith.constant 0 : index
    %c0_1 = arith.constant 0 : index
    %0 = vector.load %arg1[%c0, %c0_0, %c0_1] : memref<8x8x32xf32, #tpu.memory_space<vmem>>, vector<8x8x32xf32>
    %1 = vector.shape_cast %0 : vector<8x8x32xf32> to vector<64x32xf32>
    %c0_2 = arith.constant 0 : index
    %c0_3 = arith.constant 0 : index
    %2 = vector.load %arg3[%c0_2, %c0_3] : memref<32x128xf32, #tpu.memory_space<vmem>>, vector<32x128xf32>
    %cst = arith.constant dense<0.000000e+00> : vector<64x128xf32>
    %3 = tpu.matmul %1, %2, %cst {dimension_numbers = #tpu.dot_dimension_numbers<[1], [0], [0], [1], [0, 0, 1, 1], [], []>} : vector<64x32xf32>, vector<32x128xf32>, vector<64x128xf32> -> vector<64x128xf32>
    %4 = math.tanh %3 : vector<64x128xf32>
    %c0_4 = arith.constant 0 : index
    %c0_5 = arith.constant 0 : index
    %5 = vector.load %arg4[%c0_4, %c0_5] : memref<128x128xf32, #tpu.memory_space<vmem>>, vector<128x128xf32>
    %cst_6 = arith.constant dense<0.000000e+00> : vector<64x128xf32>
    %6 = tpu.matmul %4, %5, %cst_6 {dimension_numbers = #tpu.dot_dimension_numbers<[1], [0], [0], [1], [0, 0, 1, 1], [], []>} : vector<64x128xf32>, vector<128x128xf32>, vector<64x128xf32> -> vector<64x128xf32>
    %7 = vector.shape_cast %6 : vector<64x128xf32> to vector<8x8x128xf32>
    %c0_7 = arith.constant 0 : index
    %c0_8 = arith.constant 0 : index
    %8 = vector.load %arg2[%c0_7, %c0_8] : memref<8x8xf32, #tpu.memory_space<vmem>>, vector<8x8xf32>
    %9 = vector.shape_cast %8 : vector<8x8xf32> to vector<8x8x1xf32>
    %10 = vector.broadcast %9 : vector<8x8x1xf32> to vector<8x8x128xf32>
    %11 = arith.addf %7, %10 : vector<8x8x128xf32>
    %cst_9 = arith.constant dense<0xFF800000> : vector<8x128xf32>
    %12 = vector.multi_reduction <maximumf>, %11, %cst_9 [1] : vector<8x8x128xf32> to vector<8x128xf32>
    %13 = vector.shape_cast %12 : vector<8x128xf32> to vector<8x1x128xf32>
    %14 = vector.broadcast %13 : vector<8x1x128xf32> to vector<8x8x128xf32>
    %15 = arith.subf %11, %14 : vector<8x8x128xf32>
    %16 = math.exp %15 : vector<8x8x128xf32>
    %cst_10 = arith.constant dense<0.000000e+00> : vector<8x128xf32>
    %17 = vector.multi_reduction <add>, %16, %cst_10 [1] : vector<8x8x128xf32> to vector<8x128xf32>
    %18 = vector.shape_cast %17 : vector<8x128xf32> to vector<8x1x128xf32>
    %19 = tpu.reciprocal %18 {approx = true} : vector<8x1x128xf32> -> vector<8x1x128xf32>
    %20 = vector.broadcast %19 : vector<8x1x128xf32> to vector<8x8x128xf32>
    %21 = arith.mulf %16, %20 : vector<8x8x128xf32>
    %22 = vector.extract_strided_slice %21 {offsets = [0, 0, 0], sizes = [8, 8, 1], strides = [1, 1, 1]} : vector<8x8x128xf32> to vector<8x8x1xf32>
    %23 = vector.broadcast %22 : vector<8x8x1xf32> to vector<8x8x32xf32>
    %24 = arith.mulf %23, %0 : vector<8x8x32xf32>
    %cst_11 = arith.constant dense<0.000000e+00> : vector<8x32xf32>
    %25 = vector.multi_reduction <add>, %24, %cst_11 [1] : vector<8x8x32xf32> to vector<8x32xf32>
    %26 = vector.extract_strided_slice %21 {offsets = [0, 0, 1], sizes = [8, 8, 1], strides = [1, 1, 1]} : vector<8x8x128xf32> to vector<8x8x1xf32>
    %27 = vector.broadcast %26 : vector<8x8x1xf32> to vector<8x8x32xf32>
    %28 = arith.mulf %27, %0 : vector<8x8x32xf32>
    %cst_12 = arith.constant dense<0.000000e+00> : vector<8x32xf32>
    %29 = vector.multi_reduction <add>, %28, %cst_12 [1] : vector<8x8x32xf32> to vector<8x32xf32>
    %30 = vector.extract_strided_slice %21 {offsets = [0, 0, 2], sizes = [8, 8, 1], strides = [1, 1, 1]} : vector<8x8x128xf32> to vector<8x8x1xf32>
    %31 = vector.broadcast %30 : vector<8x8x1xf32> to vector<8x8x32xf32>
    %32 = arith.mulf %31, %0 : vector<8x8x32xf32>
    %cst_13 = arith.constant dense<0.000000e+00> : vector<8x32xf32>
    %33 = vector.multi_reduction <add>, %32, %cst_13 [1] : vector<8x8x32xf32> to vector<8x32xf32>
    %34 = vector.extract_strided_slice %21 {offsets = [0, 0, 3], sizes = [8, 8, 1], strides = [1, 1, 1]} : vector<8x8x128xf32> to vector<8x8x1xf32>
    %35 = vector.broadcast %34 : vector<8x8x1xf32> to vector<8x8x32xf32>
    %36 = arith.mulf %35, %0 : vector<8x8x32xf32>
    %cst_14 = arith.constant dense<0.000000e+00> : vector<8x32xf32>
    %37 = vector.multi_reduction <add>, %36, %cst_14 [1] : vector<8x8x32xf32> to vector<8x32xf32>
    %38 = tpu.concatenate %25, %29, %33, %37 in 1 : vector<8x32xf32>, vector<8x32xf32>, vector<8x32xf32>, vector<8x32xf32> -> vector<8x128xf32>
    %c0_15 = arith.constant 0 : index
    %c0_16 = arith.constant 0 : index
    %39 = vector.load %arg5[%c0_15, %c0_16] : memref<8x128xf32, #tpu.memory_space<vmem>>, vector<8x128xf32>
    tpu.vector_store %arg5[%c0_15, %c0_16], %38 {strides = array<i32>} : memref<8x128xf32, #tpu.memory_space<vmem>>, vector<8x128xf32>,
    return
  }
  func.func @transform_0(%arg0: i32) -> (i32, i32, i32) {
    %c0_i32 = arith.constant 0 : i32
    %c0_i32_0 = arith.constant 0 : i32
    %c0_i32_1 = arith.constant 0 : i32
    return %arg0, %c0_i32, %c0_i32_0 : i32, i32, i32
  }
  func.func @transform_1(%arg0: i32) -> (i32, i32) {
    %c0_i32 = arith.constant 0 : i32
    %c0_i32_0 = arith.constant 0 : i32
    return %arg0, %c0_i32 : i32, i32
  }
  func.func @transform_2(%arg0: i32) -> (i32, i32) {
    %c0_i32 = arith.constant 0 : i32
    %c0_i32_0 = arith.constant 0 : i32
    %c0_i32_1 = arith.constant 0 : i32
    return %c0_i32, %c0_i32_0 : i32, i32
  }
  func.func @transform_3(%arg0: i32) -> (i32, i32) {
    %c0_i32 = arith.constant 0 : i32
    %c0_i32_0 = arith.constant 0 : i32
    %c0_i32_1 = arith.constant 0 : i32
    return %c0_i32, %c0_i32_0 : i32, i32
  }
  func.func @transform_4(%arg0: i32) -> (i32, i32) {
    %c0_i32 = arith.constant 0 : i32
    %c0_i32_0 = arith.constant 0 : i32
    return %arg0, %c0_i32 : i32, i32
  }
}

</mosaic_0001>

<llo_original>
// kernel: multi_interest_self_attention.1
$region0: #{multi_interest_self_attention.1}
  #allocation0 [shape = 'u32[]', space=smem, size = 0x4, offset = 0x4, fixed_abs, tag = 'smem constant byte address 0x4 - core index']
  #allocation1 [shape = 'u32[144,128]{1,0:T(1,128)}', space=vmem, size = 0x12000, scoped, tag = 'internal scratch']
  %s0 = inlined_call_operand.vmem [shape: f32[16,8,32], index: 0, kind: input, shape index: {}]
  %s1 = inlined_call_operand.vmem [shape: f32[16,8], index: 1, kind: input, shape index: {}]
  %s2 = inlined_call_operand.vmem [shape: f32[32,128], index: 2, kind: input, shape index: {}]
  %s3 = inlined_call_operand.vmem [shape: f32[128,128], index: 3, kind: input, shape index: {}]
  %s4 = inlined_call_operand.vmem [shape: f32[16,128], index: 4, kind: output, shape index: {}]
  %s5 = sld [smem:[#allocation0]]
  $region49: #{multi_interest_self_attention.1} parent=0
    _
  %s7 = ssub.s32 1, %s5
  %s8 = scalar_select 0, %s7, %s5
  loop: start=0, step=1, limit=4
  $region2: #{multi_interest_self_attention.1} parent=0 // loop_pre_header
    _
  $region3: #{multi_interest_self_attention.1} parent=0 // loop_header
    %s10 = sphi 0, %s14
    %p11 = scmp.ge.s32.totalorder %s10, 4
    %s20 = sphi 0, %s22
    %s23 = sphi 0, %s20
    %s24 = sphi 0, %s23
    %s40 = sphi 0, %s24
    %s46 = sphi 0, %s48
    %s49 = sphi 0, %s46
    %s50 = sphi 0, %s49
    %s66 = sphi 0, %s50
    %s70 = sphi 0, %s70
    %s72 = sphi 0, %s70
    %s73 = sphi 0, %s72
    %s87 = sphi 0, %s73
    %s91 = sphi 0, %s91
    %s93 = sphi 0, %s91
    %s94 = sphi 0, %s93
    %s108 = sphi 0, %s94
    %s114 = sphi 0, %s116
    %s117 = sphi 0, %s114
    %s118 = sphi 0, %s117
    %s134 = sphi 0, %s118
  $region4: #{multi_interest_self_attention.1} parent=0 // loop_header_branch
    %13 = sbr.rel (%p11) target = $region8
  $region5: #{multi_interest_self_attention.1} parent=0 // loop_body
    %s15 = ssub.s32 %s10, 1
    %s16 = ssub.s32 %s10, 2
    %s17 = sadd.s32 %s10, 1
    %s18 = ssub.s32 %s10, %s17
    %p19 = scmp.eq.s32.totalorder %s18, 0
    %s21 = sadd.s32 %s20, 1
    %s22 = scalar_select %p19, %s20, %s21
    %p25 = pneg %p19
    %p26 = scmp.eq.s32.totalorder %s10, 1
    %p27 = por %p25, %p26
    %p28 = scmp.ne.s32.totalorder %s20, %s23
    %p29 = scmp.eq.s32.totalorder %s10, 0
    %p30 = por %p28, %p29
    %p31 = scmp.ne.s32.totalorder %s20, %s23
    %p32 = scmp.eq.s32.totalorder %s15, 1
    %p33 = por %p31, %p32
    %p34 = scmp.ne.s32.totalorder %s23, %s24
    %p35 = scmp.eq.s32.totalorder %s15, 0
    %p36 = por %p34, %p35
    %p37 = scmp.ne.s32.totalorder %s23, %s24
    %p38 = scmp.eq.s32.totalorder %s16, 1
    %p39 = por %p37, %p38
    %p41 = scmp.ne.s32.totalorder %s24, %s40
    %p42 = scmp.eq.s32.totalorder %s16, 0
    %p43 = por %p41, %p42
    %s44 = ssub.s32 %s10, %s17
    %p45 = scmp.eq.s32.totalorder %s44, 0
    %s47 = sadd.s32 %s46, 1
    %s48 = scalar_select %p45, %s46, %s47
    %p51 = pneg %p45
    %p52 = scmp.eq.s32.totalorder %s10, 1
    %p53 = por %p51, %p52
    %p54 = scmp.ne.s32.totalorder %s46, %s49
    %p55 = scmp.eq.s32.totalorder %s10, 0
    %p56 = por %p54, %p55
    %p57 = scmp.ne.s32.totalorder %s46, %s49
    %p58 = scmp.eq.s32.totalorder %s15, 1
    %p59 = por %p57, %p58
    %p60 = scmp.ne.s32.totalorder %s49, %s50
    %p61 = scmp.eq.s32.totalorder %s15, 0
    %p62 = por %p60, %p61
    %p63 = scmp.ne.s32.totalorder %s49, %s50
    %p64 = scmp.eq.s32.totalorder %s16, 1
    %p65 = por %p63, %p64
    %p67 = scmp.ne.s32.totalorder %s50, %s66
    %p68 = scmp.eq.s32.totalorder %s16, 0
    %p69 = por %p67, %p68
    %s71 = sadd.s32 %s70, 1
    %p74 = scmp.eq.s32.totalorder %s10, 1
    %p75 = scmp.ne.s32.totalorder %s70, %s72
    %p76 = scmp.eq.s32.totalorder %s10, 0
    %p77 = por %p75, %p76
    %p78 = scmp.ne.s32.totalorder %s70, %s72
    %p79 = scmp.eq.s32.totalorder %s15, 1
    %p80 = por %p78, %p79
    %p81 = scmp.ne.s32.totalorder %s72, %s73
    %p82 = scmp.eq.s32.totalorder %s15, 0
    %p83 = por %p81, %p82
    %p84 = scmp.ne.s32.totalorder %s72, %s73
    %p85 = scmp.eq.s32.totalorder %s16, 1
    %p86 = por %p84, %p85
    %p88 = scmp.ne.s32.totalorder %s73, %s87
    %p89 = scmp.eq.s32.totalorder %s16, 0
    %p90 = por %p88, %p89
    %s92 = sadd.s32 %s91, 1
    %p95 = scmp.eq.s32.totalorder %s10, 1
    %p96 = scmp.ne.s32.totalorder %s91, %s93
    %p97 = scmp.eq.s32.totalorder %s10, 0
    %p98 = por %p96, %p97
    %p99 = scmp.ne.s32.totalorder %s91, %s93
    %p100 = scmp.eq.s32.totalorder %s15, 1
    %p101 = por %p99, %p100
    %p102 = scmp.ne.s32.totalorder %s93, %s94
    %p103 = scmp.eq.s32.totalorder %s15, 0
    %p104 = por %p102, %p103
    %p105 = scmp.ne.s32.totalorder %s93, %s94
    %p106 = scmp.eq.s32.totalorder %s16, 1
    %p107 = por %p105, %p106
    %p109 = scmp.ne.s32.totalorder %s94, %s108
    %p110 = scmp.eq.s32.totalorder %s16, 0
    %p111 = por %p109, %p110
    %s112 = ssub.s32 %s10, %s17
    %p113 = scmp.eq.s32.totalorder %s112, 0
    %s115 = sadd.s32 %s114, 1
    %s116 = scalar_select %p113, %s114, %s115
    %p119 = pneg %p113
    %p120 = scmp.eq.s32.totalorder %s10, 1
    %p121 = por %p119, %p120
    %p122 = scmp.ne.s32.totalorder %s114, %s117
    %p123 = scmp.eq.s32.totalorder %s10, 0
    %p124 = por %p122, %p123
    %p125 = scmp.ne.s32.totalorder %s114, %s117
    %p126 = scmp.eq.s32.totalorder %s15, 1
    %p127 = por %p125, %p126
    %p128 = scmp.ne.s32.totalorder %s117, %s118
    %p129 = scmp.eq.s32.totalorder %s15, 0
    %p130 = por %p128, %p129
    %p131 = scmp.ne.s32.totalorder %s117, %s118
    %p132 = scmp.eq.s32.totalorder %s16, 1
    %p133 = por %p131, %p132
    %p135 = scmp.ne.s32.totalorder %s118, %s134
    %p136 = scmp.eq.s32.totalorder %s16, 0
    %p137 = por %p135, %p136
    %p138 = scmp.le.s32.totalorder 1, %s10
    %p139 = scmp.lt.s32.totalorder %s10, 3
    %p140 = pnand %p138, %p139
    %p141 = pneg %p140
    // Predicated region
    $region9: #{multi_interest_self_attention.1} parent=5 // pred_check
      _
    $region10: #{multi_interest_self_attention.1} parent=5 // pred_check_branch
      %143 = sbr.rel (%p140) target = $region12
    $region11: #{multi_interest_self_attention.1} parent=5 // pred_region
      %s144 = ssub.s32 %s10, 1
      // Predicated region
      $region13: #{multi_interest_self_attention.1} parent=11 // pred_check
        %p145 = pneg %p83
      $region14: #{multi_interest_self_attention.1} parent=11 // pred_check_branch
        %147 = sbr.rel (%p145) target = $region16
      $region15: #{multi_interest_self_attention.1} parent=11 // pred_region
        _
      $region16: #{multi_interest_self_attention.1} parent=11 // pred_fallthru
        _
      // Predicated region
      $region17: #{multi_interest_self_attention.1} parent=11 // pred_check
        %p148 = pneg %p104
      $region18: #{multi_interest_self_attention.1} parent=11 // pred_check_branch
        %150 = sbr.rel (%p148) target = $region20
      $region19: #{multi_interest_self_attention.1} parent=11 // pred_region
        _
      $region20: #{multi_interest_self_attention.1} parent=11 // pred_fallthru
        _
    $region12: #{multi_interest_self_attention.1} parent=5 // pred_fallthru
      _
    %p151 = scmp.lt.s32.totalorder %s10, 2
    // Predicated region
    $region21: #{multi_interest_self_attention.1} parent=5 // pred_check
      %p152 = pneg %p151
    $region22: #{multi_interest_self_attention.1} parent=5 // pred_check_branch
      %154 = sbr.rel (%p152) target = $region24
    $region23: #{multi_interest_self_attention.1} parent=5 // pred_region
      // Predicated region
      $region25: #{multi_interest_self_attention.1} parent=23 // pred_check
        %p155 = pneg %p30
      $region26: #{multi_interest_self_attention.1} parent=23 // pred_check_branch
        %157 = sbr.rel (%p155) target = $region28
      $region27: #{multi_interest_self_attention.1} parent=23 // pred_region
        %s158 = smul.u32 8, %s10
        %p159 = scmp.lt.s32.totalorder %s158, 15
        %s160 = scalar_select %p159, %s158, 15
        %s161 = smul.addr %s160, 8
        %s162 = scalar_lea.vmem %s0, %s161
        %s163 = smul.u32 8, %s10
      $region28: #{multi_interest_self_attention.1} parent=23 // pred_fallthru
        _
      // Predicated region
      $region29: #{multi_interest_self_attention.1} parent=23 // pred_check
        %p164 = pneg %p56
      $region30: #{multi_interest_self_attention.1} parent=23 // pred_check_branch
        %166 = sbr.rel (%p164) target = $region32
      $region31: #{multi_interest_self_attention.1} parent=23 // pred_region
        %p167 = scmp.lt.s32.totalorder %s10, 1
        %s168 = scalar_select %p167, %s10, 1
        %s169 = smul.addr %s168, 8
        %s170 = scalar_lea.vmem %s1, %s169
      $region32: #{multi_interest_self_attention.1} parent=23 // pred_fallthru
        _
    $region24: #{multi_interest_self_attention.1} parent=5 // pred_fallthru
      _
    %p171 = scmp.le.s32.totalorder 1, %s10
    %p172 = scmp.lt.s32.totalorder %s10, 3
    %p173 = pnand %p171, %p172
    %p174 = pneg %p173
    // Predicated region
    $region33: #{multi_interest_self_attention.1} parent=5 // pred_check
      _
    $region34: #{multi_interest_self_attention.1} parent=5 // pred_check_branch
      %176 = sbr.rel (%p173) target = $region36
    $region35: #{multi_interest_self_attention.1} parent=5 // pred_region
      %s177 = ssub.s32 %s10, 1
      %s178 = smul.u32 8, %s15
      %p179 = scmp.lt.s32.totalorder %s178, 15
      %s180 = scalar_select %p179, %s178, 15
      %s181 = smul.addr %s180, 8
      %s182 = scalar_lea.vmem %s0, %s181
      %p183 = pneg %p36
      %p184 = pneg %p33
      %p185 = scmp.lt.s32.totalorder %s15, 1
      %s186 = scalar_select %p185, %s15, 1
      %s187 = smul.addr %s186, 8
      %s188 = scalar_lea.vmem %s1, %s187
      %p189 = pneg %p62
      %p190 = pneg %p59
      %p191 = pneg %p83
      %p192 = pneg %p80
      %p193 = pneg %p104
      %p194 = pneg %p101
      %p195 = pneg %p130
      %p196 = pneg %p127
      %p197 = scmp.lt.s32.totalorder %s15, 1
      %s198 = scalar_select %p197, %s15, 1
      %s199 = smul.addr %s198, 8
      %s200 = scalar_lea.vmem %s4, %s199
      %s201 = smul.u32 8, %s15
      %p202 = scmp.lt.s32.totalorder %s201, 15
      %s203 = scalar_select %p202, %s201, 15
      %s204 = smul.addr %s203, 8
      %s205 = scalar_lea.vmem %s0, %s204
      %s206 = smul.u32 8, %s15
      %p207 = scmp.lt.s32.totalorder %s15, 1
      %s208 = scalar_select %p207, %s15, 1
      %s209 = smul.addr %s208, 8
      %s210 = scalar_lea.vmem %s1, %s209
      %p211 = scmp.lt.s32.totalorder %s15, 1
      %s212 = scalar_select %p211, %s15, 1
      %s213 = smul.addr %s212, 8
      %s214 = scalar_lea.vmem %s4, %s213
      %v215 = vld [vmem:[%s205] sm:$0xff]
      %v216 = vld [vmem:[%s205 + $0x8] sm:$0xff]
      %v217 = vld [vmem:[%s205 + $0x10] sm:$0xff]
      %v218 = vld [vmem:[%s205 + $0x18] sm:$0xff]
      %v219 = vld [vmem:[%s205 + $0x20] sm:$0xff]
      %v220 = vld [vmem:[%s205 + $0x28] sm:$0xff]
      %v221 = vld [vmem:[%s205 + $0x30] sm:$0xff]
      %v222 = vld [vmem:[%s205 + $0x38] sm:$0xff]
      %v223 = vld [vmem:[%s2] sm:$0xff]
      %v224 = vld [vmem:[%s2 + $0x8] sm:$0xff]
      %v225 = vld [vmem:[%s2 + $0x10] sm:$0xff]
      %v226 = vld [vmem:[%s2 + $0x18] sm:$0xff]
      %vm227 = vcmask 261120
      %v229 = vsel %vm227, %v215, 0
      %v232 = vsel %vm227, %v216, 0
      %v235 = vsel %vm227, %v217, 0
      %v238 = vsel %vm227, %v218, 0
      %v241 = vsel %vm227, %v219, 0
      %v244 = vsel %vm227, %v220, 0
      %v247 = vsel %vm227, %v221, 0
      %v250 = vsel %vm227, %v222, 0
      %252 = vmatprep.subr.mxu0 0.0
      %253 = vmatpush1.msra.mxu0 %v223
      %254 = vmatprep.subr.mxu0 0.0
      %255 = vmatpush1.msra.mxu0 %v224
      %256 = vmatprep.subr.mxu0 0.0
      %257 = vmatpush1.msra.mxu0 %v225
      %258 = vmatprep.subr.mxu0 0.0
      %259 = vmatpush1.msra.mxu0 %v226
      %260 = vmatprep.subr.mxu0 0.0
      %261 = vmatpush1.msra.mxu0 0.0
      %262 = vmatprep.subr.mxu0 0.0
      %263 = vmatpush1.msra.mxu0 0.0
      %264 = vmatprep.subr.mxu0 0.0
      %265 = vmatpush1.msra.mxu0 0.0
      %266 = vmatprep.subr.mxu0 0.0
      %267 = vmatpush1.msra.mxu0 0.0
      %268 = vmatprep.subr.mxu0 0.0
      %269 = vmatpush1.msra.mxu0 0.0
      %270 = vmatprep.subr.mxu0 0.0
      %271 = vmatpush1.msra.mxu0 0.0
      %272 = vmatprep.subr.mxu0 0.0
      %273 = vmatpush1.msra.mxu0 0.0
      %274 = vmatprep.subr.mxu0 0.0
      %275 = vmatpush1.msra.mxu0 0.0
      %276 = vmatprep.subr.mxu0 0.0
      %277 = vmatpush1.msra.mxu0 0.0
      %278 = vmatprep.subr.mxu0 0.0
      %279 = vmatpush1.msra.mxu0 0.0
      %280 = vmatprep.subr.mxu0 0.0
      %281 = vmatpush1.msra.mxu0 0.0
      %282 = vmatprep.subr.mxu0 0.0
      %283 = vmatpush1.msra.mxu0 0.0
      %284 = vmatprep.subr.mxu0 0.0
      %285 = vmatpush1.msra.mxu0 0.0
      %286 = vmatprep.subr.mxu0 0.0
      %287 = vmatpush1.msra.mxu0 0.0
      %288 = vmatprep.subr.mxu0 0.0
      %289 = vmatpush1.msra.mxu0 0.0
      %290 = vmatprep.subr.mxu0 0.0
      %291 = vmatpush1.msra.mxu0 0.0
      %292 = vmatprep.subr.mxu0 0.0
      %293 = vmatpush1.msra.mxu0 0.0
      %294 = vmatprep.subr.mxu0 0.0
      %295 = vmatpush1.msra.mxu0 0.0
      %296 = vmatprep.subr.mxu0 0.0
      %297 = vmatpush1.msra.mxu0 0.0
      %298 = vmatprep.subr.mxu0 0.0
      %299 = vmatpush1.msra.mxu0 0.0
      %300 = vmatprep.subr.mxu0 0.0
      %301 = vmatpush1.msra.mxu0 0.0
      %302 = vmatprep.subr.mxu0 0.0
      %303 = vmatpush1.msra.mxu0 0.0
      %304 = vmatprep.subr.mxu0 0.0
      %305 = vmatpush1.msra.mxu0 0.0
      %306 = vmatprep.subr.mxu0 0.0
      %307 = vmatpush1.msra.mxu0 0.0
      %308 = vmatprep.subr.mxu0 0.0
      %309 = vmatpush1.msra.mxu0 0.0
      %310 = vmatprep.subr.mxu0 0.0
      %311 = vmatpush1.msra.mxu0 0.0
      %312 = vmatprep.subr.mxu0 0.0
      %313 = vmatpush1.msra.mxu0 0.0
      %314 = vmatprep.subr.mxu0 0.0
      %315 = vmatpush1.msra.mxu0 0.0
      %316 = vmatprep.mubr.f32.mxu0 0.0
      %317 = vmatmul.mubr.f32.gmra.mrb[0].mxu0 %v229
      %v318 = vpop.f32.mrb[0].mxu0
      %v319 = vadd.f32 0.0, %v318
      %v320 = vpop.f32.mrb[0].mxu0
      %321 = vmatprep.mubr.f32.mxu0 0.0
      %322 = vmatmul.mubr.f32.gmra.mrb[0].mxu0 %v232
      %v323 = vpop.f32.mrb[0].mxu0
      %v324 = vadd.f32 0.0, %v323
      %v325 = vpop.f32.mrb[0].mxu0
      %326 = vmatprep.mubr.f32.mxu0 0.0
      %327 = vmatmul.mubr.f32.gmra.mrb[0].mxu0 %v235
      %v328 = vpop.f32.mrb[0].mxu0
      %v329 = vadd.f32 0.0, %v328
      %v330 = vpop.f32.mrb[0].mxu0
      %331 = vmatprep.mubr.f32.mxu0 0.0
      %332 = vmatmul.mubr.f32.gmra.mrb[0].mxu0 %v238
      %v333 = vpop.f32.mrb[0].mxu0
      %v334 = vadd.f32 0.0, %v333
      %v335 = vpop.f32.mrb[0].mxu0
      %336 = vmatprep.mubr.f32.mxu0 0.0
      %337 = vmatmul.mubr.f32.gmra.mrb[0].mxu0 %v241
      %v338 = vpop.f32.mrb[0].mxu0
      %v339 = vadd.f32 0.0, %v338
      %v340 = vpop.f32.mrb[0].mxu0
      %341 = vmatprep.mubr.f32.mxu0 0.0
      %342 = vmatmul.mubr.f32.gmra.mrb[0].mxu0 %v244
      %v343 = vpop.f32.mrb[0].mxu0
      %v344 = vadd.f32 0.0, %v343
      %v345 = vpop.f32.mrb[0].mxu0
      %346 = vmatprep.mubr.f32.mxu0 0.0
      %347 = vmatmul.mubr.f32.gmra.mrb[0].mxu0 %v247
      %v348 = vpop.f32.mrb[0].mxu0
      %v349 = vadd.f32 0.0, %v348
      %v350 = vpop.f32.mrb[0].mxu0
      %351 = vmatprep.mubr.f32.mxu0 0.0
      %352 = vmatmul.mubr.f32.gmra.mrb[0].mxu0 %v250
      %v353 = vpop.f32.mrb[0].mxu0
      %v354 = vadd.f32 0.0, %v353
      %v355 = vpop.f32.mrb[0].mxu0
      %356 = vdwg.mxu0
      %v357 = vtanh.pop %v319
      %v358 = vtanh.pop %v324
      %v359 = vtanh.pop %v329
      %v360 = vtanh.pop %v334
      %v361 = vtanh.pop %v339
      %v362 = vtanh.pop %v344
      %v363 = vtanh.pop %v349
      %v364 = vtanh.pop %v354
      %v365 = vld [vmem:[%s3] sm:$0xff]
      %v366 = vld [vmem:[%s3 + $0x8] sm:$0xff]
      %v367 = vld [vmem:[%s3 + $0x10] sm:$0xff]
      %v368 = vld [vmem:[%s3 + $0x18] sm:$0xff]
      %v369 = vld [vmem:[%s3 + $0x20] sm:$0xff]
      %v370 = vld [vmem:[%s3 + $0x28] sm:$0xff]
      %v371 = vld [vmem:[%s3 + $0x30] sm:$0xff]
      %v372 = vld [vmem:[%s3 + $0x38] sm:$0xff]
      %v373 = vld [vmem:[%s3 + $0x40] sm:$0xff]
      %v374 = vld [vmem:[%s3 + $0x48] sm:$0xff]
      %v375 = vld [vmem:[%s3 + $0x50] sm:$0xff]
      %v376 = vld [vmem:[%s3 + $0x58] sm:$0xff]
      %v377 = vld [vmem:[%s3 + $0x60] sm:$0xff]
      %v378 = vld [vmem:[%s3 + $0x68] sm:$0xff]
      %v379 = vld [vmem:[%s3 + $0x70] sm:$0xff]
      %v380 = vld [vmem:[%s3 + $0x78] sm:$0xff]
      %381 = vmatprep.subr.mxu0 0.0
      %382 = vmatpush1.msra.mxu0 %v365
      %383 = vmatprep.subr.mxu0 0.0
      %384 = vmatpush1.msra.mxu0 %v366
      %385 = vmatprep.subr.mxu0 0.0
      %386 = vmatpush1.msra.mxu0 %v367
      %387 = vmatprep.subr.mxu0 0.0
      %388 = vmatpush1.msra.mxu0 %v368
      %389 = vmatprep.subr.mxu0 0.0
      %390 = vmatpush1.msra.mxu0 %v369
      %391 = vmatprep.subr.mxu0 0.0
      %392 = vmatpush1.msra.mxu0 %v370
      %393 = vmatprep.subr.mxu0 0.0
      %394 = vmatpush1.msra.mxu0 %v371
      %395 = vmatprep.subr.mxu0 0.0
      %396 = vmatpush1.msra.mxu0 %v372
      %397 = vmatprep.subr.mxu0 0.0
      %398 = vmatpush1.msra.mxu0 %v373
      %399 = vmatprep.subr.mxu0 0.0
      %400 = vmatpush1.msra.mxu0 %v374
      %401 = vmatprep.subr.mxu0 0.0
      %402 = vmatpush1.msra.mxu0 %v375
      %403 = vmatprep.subr.mxu0 0.0
      %404 = vmatpush1.msra.mxu0 %v376
      %405 = vmatprep.subr.mxu0 0.0
      %406 = vmatpush1.msra.mxu0 %v377
      %407 = vmatprep.subr.mxu0 0.0
      %408 = vmatpush1.msra.mxu0 %v378
      %409 = vmatprep.subr.mxu0 0.0
      %410 = vmatpush1.msra.mxu0 %v379
      %411 = vmatprep.subr.mxu0 0.0
      %412 = vmatpush1.msra.mxu0 %v380
      %413 = vmatprep.subr.mxu0 0.0
      %414 = vmatpush1.msra.mxu0 0.0
      %415 = vmatprep.subr.mxu0 0.0
      %416 = vmatpush1.msra.mxu0 0.0
      %417 = vmatprep.subr.mxu0 0.0
      %418 = vmatpush1.msra.mxu0 0.0
      %419 = vmatprep.subr.mxu0 0.0
      %420 = vmatpush1.msra.mxu0 0.0
      %421 = vmatprep.subr.mxu0 0.0
      %422 = vmatpush1.msra.mxu0 0.0
      %423 = vmatprep.subr.mxu0 0.0
      %424 = vmatpush1.msra.mxu0 0.0
      %425 = vmatprep.subr.mxu0 0.0
      %426 = vmatpush1.msra.mxu0 0.0
      %427 = vmatprep.subr.mxu0 0.0
      %428 = vmatpush1.msra.mxu0 0.0
      %429 = vmatprep.subr.mxu0 0.0
      %430 = vmatpush1.msra.mxu0 0.0
      %431 = vmatprep.subr.mxu0 0.0
      %432 = vmatpush1.msra.mxu0 0.0
      %433 = vmatprep.subr.mxu0 0.0
      %434 = vmatpush1.msra.mxu0 0.0
      %435 = vmatprep.subr.mxu0 0.0
      %436 = vmatpush1.msra.mxu0 0.0
      %437 = vmatprep.subr.mxu0 0.0
      %438 = vmatpush1.msra.mxu0 0.0
      %439 = vmatprep.subr.mxu0 0.0
      %440 = vmatpush1.msra.mxu0 0.0
      %441 = vmatprep.subr.mxu0 0.0
      %442 = vmatpush1.msra.mxu0 0.0
      %443 = vmatprep.subr.mxu0 0.0
      %444 = vmatpush1.msra.mxu0 0.0
      %445 = vmatprep.mubr.f32.mxu0 0.0
      %446 = vmatmul.mubr.f32.gmra.mrb[0].mxu0 %v357
      %v447 = vpop.f32.mrb[0].mxu0
      %v448 = vadd.f32 0.0, %v447
      %v449 = vpop.f32.mrb[0].mxu0
      %450 = vmatprep.mubr.f32.mxu0 0.0
      %451 = vmatmul.mubr.f32.gmra.mrb[0].mxu0 %v358
      %v452 = vpop.f32.mrb[0].mxu0
      %v453 = vadd.f32 0.0, %v452
      %v454 = vpop.f32.mrb[0].mxu0
      %455 = vmatprep.mubr.f32.mxu0 0.0
      %456 = vmatmul.mubr.f32.gmra.mrb[0].mxu0 %v359
      %v457 = vpop.f32.mrb[0].mxu0
      %v458 = vadd.f32 0.0, %v457
      %v459 = vpop.f32.mrb[0].mxu0
      %460 = vmatprep.mubr.f32.mxu0 0.0
      %461 = vmatmul.mubr.f32.gmra.mrb[0].mxu0 %v360
      %v462 = vpop.f32.mrb[0].mxu0
      %v463 = vadd.f32 0.0, %v462
      %v464 = vpop.f32.mrb[0].mxu0
      %465 = vmatprep.mubr.f32.mxu0 0.0
      %466 = vmatmul.mubr.f32.gmra.mrb[0].mxu0 %v361
      %v467 = vpop.f32.mrb[0].mxu0
      %v468 = vadd.f32 0.0, %v467
      %v469 = vpop.f32.mrb[0].mxu0
      %470 = vmatprep.mubr.f32.mxu0 0.0
      %471 = vmatmul.mubr.f32.gmra.mrb[0].mxu0 %v362
      %v472 = vpop.f32.mrb[0].mxu0
      %v473 = vadd.f32 0.0, %v472
      %v474 = vpop.f32.mrb[0].mxu0
      %475 = vmatprep.mubr.f32.mxu0 0.0
      %476 = vmatmul.mubr.f32.gmra.mrb[0].mxu0 %v363
      %v477 = vpop.f32.mrb[0].mxu0
      %v478 = vadd.f32 0.0, %v477
      %v479 = vpop.f32.mrb[0].mxu0
      %480 = vmatprep.mubr.f32.mxu0 0.0
      %481 = vmatmul.mubr.f32.gmra.mrb[0].mxu0 %v364
      %v482 = vpop.f32.mrb[0].mxu0
      %v483 = vadd.f32 0.0, %v482
      %v484 = vpop.f32.mrb[0].mxu0
      %485 = vdwg.mxu0
      %v486 = vld [vmem:[%s210] sm:$0xff]
      %v487 = vlaneseq
      %v488 = vshrl.u32 %v487, 7
      %v489 = vsub.s32 0, %v488
      %v490 = vrot.slane %v486, %v489
      %492 = vbcast.lane.b32.xlu0 %v490, 256
      %v493 = vpop.permute.xlu0 %492
      %v494 = vlaneseq
      %v495 = vshrl.u32 %v494, 7
      %v496 = vsub.s32 1, %v495
      %v497 = vrot.slane %v486, %v496
      %499 = vbcast.lane.b32.xlu0 %v497, 256
      %v500 = vpop.permute.xlu0 %499
      %v501 = vlaneseq
      %v502 = vshrl.u32 %v501, 7
      %v503 = vsub.s32 2, %v502
      %v504 = vrot.slane %v486, %v503
      %506 = vbcast.lane.b32.xlu0 %v504, 256
      %v507 = vpop.permute.xlu0 %506
      %v508 = vlaneseq
      %v509 = vshrl.u32 %v508, 7
      %v510 = vsub.s32 3, %v509
      %v511 = vrot.slane %v486, %v510
      %513 = vbcast.lane.b32.xlu0 %v511, 256
      %v514 = vpop.permute.xlu0 %513
      %v515 = vlaneseq
      %v516 = vshrl.u32 %v515, 7
      %v517 = vsub.s32 4, %v516
      %v518 = vrot.slane %v486, %v517
      %520 = vbcast.lane.b32.xlu0 %v518, 256
      %v521 = vpop.permute.xlu0 %520
      %v522 = vlaneseq
      %v523 = vshrl.u32 %v522, 7
      %v524 = vsub.s32 5, %v523
      %v525 = vrot.slane %v486, %v524
      %527 = vbcast.lane.b32.xlu0 %v525, 256
      %v528 = vpop.permute.xlu0 %527
      %v529 = vlaneseq
      %v530 = vshrl.u32 %v529, 7
      %v531 = vsub.s32 6, %v530
      %v532 = vrot.slane %v486, %v531
      %534 = vbcast.lane.b32.xlu0 %v532, 256
      %v535 = vpop.permute.xlu0 %534
      %v536 = vlaneseq
      %v537 = vshrl.u32 %v536, 7
      %v538 = vsub.s32 7, %v537
      %v539 = vrot.slane %v486, %v538
      %541 = vbcast.lane.b32.xlu0 %v539, 256
      %v542 = vpop.permute.xlu0 %541
      %v543 = vadd.f32 %v448, %v493
      %v544 = vadd.f32 %v453, %v500
      %v545 = vadd.f32 %v458, %v507
      %v546 = vadd.f32 %v463, %v514
      %v547 = vadd.f32 %v468, %v521
      %v548 = vadd.f32 %v473, %v528
      %v549 = vadd.f32 %v478, %v535
      %v550 = vadd.f32 %v483, %v542
      %v551 = vrot.slane %v543, 4
      %v552 = vmax.f32 %v543, %v551
      %v553 = vrot.slane %v552, 2
      %v554 = vmax.f32 %v552, %v553
      %v555 = vrot.slane %v554, 1
      %v556 = vmax.f32 %v554, %v555
      %v557 = vrot.slane %v544, 4
      %v558 = vmax.f32 %v544, %v557
      %v559 = vrot.slane %v558, 2
      %v560 = vmax.f32 %v558, %v559
      %v561 = vrot.slane %v560, 1
      %v562 = vmax.f32 %v560, %v561
      %v563 = vrot.slane %v545, 4
      %v564 = vmax.f32 %v545, %v563
      %v565 = vrot.slane %v564, 2
      %v566 = vmax.f32 %v564, %v565
      %v567 = vrot.slane %v566, 1
      %v568 = vmax.f32 %v566, %v567
      %v569 = vrot.slane %v546, 4
      %v570 = vmax.f32 %v546, %v569
      %v571 = vrot.slane %v570, 2
      %v572 = vmax.f32 %v570, %v571
      %v573 = vrot.slane %v572, 1
      %v574 = vmax.f32 %v572, %v573
      %v575 = vrot.slane %v547, 4
      %v576 = vmax.f32 %v547, %v575
      %v577 = vrot.slane %v576, 2
      %v578 = vmax.f32 %v576, %v577
      %v579 = vrot.slane %v578, 1
      %v580 = vmax.f32 %v578, %v579
      %v581 = vrot.slane %v548, 4
      %v582 = vmax.f32 %v548, %v581
      %v583 = vrot.slane %v582, 2
      %v584 = vmax.f32 %v582, %v583
      %v585 = vrot.slane %v584, 1
      %v586 = vmax.f32 %v584, %v585
      %v587 = vrot.slane %v549, 4
      %v588 = vmax.f32 %v549, %v587
      %v589 = vrot.slane %v588, 2
      %v590 = vmax.f32 %v588, %v589
      %v591 = vrot.slane %v590, 1
      %v592 = vmax.f32 %v590, %v591
      %v593 = vrot.slane %v550, 4
      %v594 = vmax.f32 %v550, %v593
      %v595 = vrot.slane %v594, 2
      %v596 = vmax.f32 %v594, %v595
      %v597 = vrot.slane %v596, 1
      %v598 = vmax.f32 %v596, %v597
      %v599 = vsub.f32 %v543, %v556
      %v600 = vsub.f32 %v544, %v562
      %v601 = vsub.f32 %v545, %v568
      %v602 = vsub.f32 %v546, %v574
      %v603 = vsub.f32 %v547, %v580
      %v604 = vsub.f32 %v548, %v586
      %v605 = vsub.f32 %v549, %v592
      %v606 = vsub.f32 %v550, %v598
      %v607 = vmul.f32 %v599, 1.442695
      %v608 = vpow.pop %v607
      %v609 = vmul.f32 %v600, 1.442695
      %v610 = vpow.pop %v609
      %v611 = vmul.f32 %v601, 1.442695
      %v612 = vpow.pop %v611
      %v613 = vmul.f32 %v602, 1.442695
      %v614 = vpow.pop %v613
      %v615 = vmul.f32 %v603, 1.442695
      %v616 = vpow.pop %v615
      %v617 = vmul.f32 %v604, 1.442695
      %v618 = vpow.pop %v617
      %v619 = vmul.f32 %v605, 1.442695
      %v620 = vpow.pop %v619
      %v621 = vmul.f32 %v606, 1.442695
      %v622 = vpow.pop %v621
      %v623 = vrot.slane %v608, 4
      %v624 = vadd.f32 %v608, %v623
      %v625 = vrot.slane %v624, 2
      %v626 = vadd.f32 %v624, %v625
      %v627 = vrot.slane %v626, 1
      %v628 = vadd.f32 %v626, %v627
      %v629 = vrot.slane %v610, 4
      %v630 = vadd.f32 %v610, %v629
      %v631 = vrot.slane %v630, 2
      %v632 = vadd.f32 %v630, %v631
      %v633 = vrot.slane %v632, 1
      %v634 = vadd.f32 %v632, %v633
      %v635 = vrot.slane %v612, 4
      %v636 = vadd.f32 %v612, %v635
      %v637 = vrot.slane %v636, 2
      %v638 = vadd.f32 %v636, %v637
      %v639 = vrot.slane %v638, 1
      %v640 = vadd.f32 %v638, %v639
      %v641 = vrot.slane %v614, 4
      %v642 = vadd.f32 %v614, %v641
      %v643 = vrot.slane %v642, 2
      %v644 = vadd.f32 %v642, %v643
      %v645 = vrot.slane %v644, 1
      %v646 = vadd.f32 %v644, %v645
      %v647 = vrot.slane %v616, 4
      %v648 = vadd.f32 %v616, %v647
      %v649 = vrot.slane %v648, 2
      %v650 = vadd.f32 %v648, %v649
      %v651 = vrot.slane %v650, 1
      %v652 = vadd.f32 %v650, %v651
      %v653 = vrot.slane %v618, 4
      %v654 = vadd.f32 %v618, %v653
      %v655 = vrot.slane %v654, 2
      %v656 = vadd.f32 %v654, %v655
      %v657 = vrot.slane %v656, 1
      %v658 = vadd.f32 %v656, %v657
      %v659 = vrot.slane %v620, 4
      %v660 = vadd.f32 %v620, %v659
      %v661 = vrot.slane %v660, 2
      %v662 = vadd.f32 %v660, %v661
      %v663 = vrot.slane %v662, 1
      %v664 = vadd.f32 %v662, %v663
      %v665 = vrot.slane %v622, 4
      %v666 = vadd.f32 %v622, %v665
      %v667 = vrot.slane %v666, 2
      %v668 = vadd.f32 %v666, %v667
      %v669 = vrot.slane %v668, 1
      %v670 = vadd.f32 %v668, %v669
      %v671 = vrcp.pop %v628
      %v672 = vrcp.pop %v634
      %v673 = vrcp.pop %v640
      %v674 = vrcp.pop %v646
      %v675 = vrcp.pop %v652
      %v676 = vrcp.pop %v658
      %v677 = vrcp.pop %v664
      %v678 = vrcp.pop %v670
      %v679 = vmul.f32 %v608, %v671
      %v680 = vmul.f32 %v610, %v672
      %v681 = vmul.f32 %v612, %v673
      %v682 = vmul.f32 %v614, %v674
      %v683 = vmul.f32 %v616, %v675
      %v684 = vmul.f32 %v618, %v676
      %v685 = vmul.f32 %v620, %v677
      %v686 = vmul.f32 %v622, %v678
      %688 = vset.pattern.permute.xlu0 0
      %689 = vperm.xlu0 %688, %v679
      %v690 = vpop.permute.xlu0 %689
      %693 = vset.pattern.permute.xlu0 0
      %694 = vperm.xlu0 %693, %v680
      %v695 = vpop.permute.xlu0 %694
      %698 = vset.pattern.permute.xlu0 0
      %699 = vperm.xlu0 %698, %v681
      %v700 = vpop.permute.xlu0 %699
      %703 = vset.pattern.permute.xlu0 0
      %704 = vperm.xlu0 %703, %v682
      %v705 = vpop.permute.xlu0 %704
      %708 = vset.pattern.permute.xlu0 0
      %709 = vperm.xlu0 %708, %v683
      %v710 = vpop.permute.xlu0 %709
      %713 = vset.pattern.permute.xlu0 0
      %714 = vperm.xlu0 %713, %v684
      %v715 = vpop.permute.xlu0 %714
      %718 = vset.pattern.permute.xlu0 0
      %719 = vperm.xlu0 %718, %v685
      %v720 = vpop.permute.xlu0 %719
      %723 = vset.pattern.permute.xlu0 0
      %724 = vperm.xlu0 %723, %v686
      %v725 = vpop.permute.xlu0 %724
      %v727 = vmul.f32 %v690, %v215
      %v728 = vmul.f32 %v695, %v216
      %v729 = vmul.f32 %v700, %v217
      %v730 = vmul.f32 %v705, %v218
      %v731 = vmul.f32 %v710, %v219
      %v732 = vmul.f32 %v715, %v220
      %v733 = vmul.f32 %v720, %v221
      %v734 = vmul.f32 %v725, %v222
      %v735 = vsel %vm227, %v727, 0.0
      %v736 = vrot.slane %v735, 4
      %v737 = vadd.f32 %v735, %v736
      %v738 = vrot.slane %v737, 2
      %v739 = vadd.f32 %v737, %v738
      %v740 = vrot.slane %v739, 1
      %v741 = vadd.f32 %v739, %v740
      %v742 = vsel %vm227, %v728, 0.0
      %v743 = vrot.slane %v742, 4
      %v744 = vadd.f32 %v742, %v743
      %v745 = vrot.slane %v744, 2
      %v746 = vadd.f32 %v744, %v745
      %v747 = vrot.slane %v746, 1
      %v748 = vadd.f32 %v746, %v747
      %v749 = vsel %vm227, %v729, 0.0
      %v750 = vrot.slane %v749, 4
      %v751 = vadd.f32 %v749, %v750
      %v752 = vrot.slane %v751, 2
      %v753 = vadd.f32 %v751, %v752
      %v754 = vrot.slane %v753, 1
      %v755 = vadd.f32 %v753, %v754
      %v756 = vsel %vm227, %v730, 0.0
      %v757 = vrot.slane %v756, 4
      %v758 = vadd.f32 %v756, %v757
      %v759 = vrot.slane %v758, 2
      %v760 = vadd.f32 %v758, %v759
      %v761 = vrot.slane %v760, 1
      %v762 = vadd.f32 %v760, %v761
      %v763 = vsel %vm227, %v731, 0.0
      %v764 = vrot.slane %v763, 4
      %v765 = vadd.f32 %v763, %v764
      %v766 = vrot.slane %v765, 2
      %v767 = vadd.f32 %v765, %v766
      %v768 = vrot.slane %v767, 1
      %v769 = vadd.f32 %v767, %v768
      %v770 = vsel %vm227, %v732, 0.0
      %v771 = vrot.slane %v770, 4
      %v772 = vadd.f32 %v770, %v771
      %v773 = vrot.slane %v772, 2
      %v774 = vadd.f32 %v772, %v773
      %v775 = vrot.slane %v774, 1
      %v776 = vadd.f32 %v774, %v775
      %v777 = vsel %vm227, %v733, 0.0
      %v778 = vrot.slane %v777, 4
      %v779 = vadd.f32 %v777, %v778
      %v780 = vrot.slane %v779, 2
      %v781 = vadd.f32 %v779, %v780
      %v782 = vrot.slane %v781, 1
      %v783 = vadd.f32 %v781, %v782
      %v784 = vsel %vm227, %v734, 0.0
      %v785 = vrot.slane %v784, 4
      %v786 = vadd.f32 %v784, %v785
      %v787 = vrot.slane %v786, 2
      %v788 = vadd.f32 %v786, %v787
      %v789 = vrot.slane %v788, 1
      %v790 = vadd.f32 %v788, %v789
      %791 = vset.pattern.permute.xlu0 1
      %792 = vperm.xlu0 %791, %v679
      %v793 = vpop.permute.xlu0 %792
      %795 = vset.pattern.permute.xlu0 1
      %796 = vperm.xlu0 %795, %v680
      %v797 = vpop.permute.xlu0 %796
      %799 = vset.pattern.permute.xlu0 1
      %800 = vperm.xlu0 %799, %v681
      %v801 = vpop.permute.xlu0 %800
      %803 = vset.pattern.permute.xlu0 1
      %804 = vperm.xlu0 %803, %v682
      %v805 = vpop.permute.xlu0 %804
      %807 = vset.pattern.permute.xlu0 1
      %808 = vperm.xlu0 %807, %v683
      %v809 = vpop.permute.xlu0 %808
      %811 = vset.pattern.permute.xlu0 1
      %812 = vperm.xlu0 %811, %v684
      %v813 = vpop.permute.xlu0 %812
      %815 = vset.pattern.permute.xlu0 1
      %816 = vperm.xlu0 %815, %v685
      %v817 = vpop.permute.xlu0 %816
      %819 = vset.pattern.permute.xlu0 1
      %820 = vperm.xlu0 %819, %v686
      %v821 = vpop.permute.xlu0 %820
      %v823 = vmul.f32 %v793, %v215
      %v824 = vmul.f32 %v797, %v216
      %v825 = vmul.f32 %v801, %v217
      %v826 = vmul.f32 %v805, %v218
      %v827 = vmul.f32 %v809, %v219
      %v828 = vmul.f32 %v813, %v220
      %v829 = vmul.f32 %v817, %v221
      %v830 = vmul.f32 %v821, %v222
      %v831 = vsel %vm227, %v823, 0.0
      %v832 = vrot.slane %v831, 4
      %v833 = vadd.f32 %v831, %v832
      %v834 = vrot.slane %v833, 2
      %v835 = vadd.f32 %v833, %v834
      %v836 = vrot.slane %v835, 1
      %v837 = vadd.f32 %v835, %v836
      %v838 = vsel %vm227, %v824, 0.0
      %v839 = vrot.slane %v838, 4
      %v840 = vadd.f32 %v838, %v839
      %v841 = vrot.slane %v840, 2
      %v842 = vadd.f32 %v840, %v841
      %v843 = vrot.slane %v842, 1
      %v844 = vadd.f32 %v842, %v843
      %v845 = vsel %vm227, %v825, 0.0
      %v846 = vrot.slane %v845, 4
      %v847 = vadd.f32 %v845, %v846
      %v848 = vrot.slane %v847, 2
      %v849 = vadd.f32 %v847, %v848
      %v850 = vrot.slane %v849, 1
      %v851 = vadd.f32 %v849, %v850
      %v852 = vsel %vm227, %v826, 0.0
      %v853 = vrot.slane %v852, 4
      %v854 = vadd.f32 %v852, %v853
      %v855 = vrot.slane %v854, 2
      %v856 = vadd.f32 %v854, %v855
      %v857 = vrot.slane %v856, 1
      %v858 = vadd.f32 %v856, %v857
      %v859 = vsel %vm227, %v827, 0.0
      %v860 = vrot.slane %v859, 4
      %v861 = vadd.f32 %v859, %v860
      %v862 = vrot.slane %v861, 2
      %v863 = vadd.f32 %v861, %v862
      %v864 = vrot.slane %v863, 1
      %v865 = vadd.f32 %v863, %v864
      %v866 = vsel %vm227, %v828, 0.0
      %v867 = vrot.slane %v866, 4
      %v868 = vadd.f32 %v866, %v867
      %v869 = vrot.slane %v868, 2
      %v870 = vadd.f32 %v868, %v869
      %v871 = vrot.slane %v870, 1
      %v872 = vadd.f32 %v870, %v871
      %v873 = vsel %vm227, %v829, 0.0
      %v874 = vrot.slane %v873, 4
      %v875 = vadd.f32 %v873, %v874
      %v876 = vrot.slane %v875, 2
      %v877 = vadd.f32 %v875, %v876
      %v878 = vrot.slane %v877, 1
      %v879 = vadd.f32 %v877, %v878
      %v880 = vsel %vm227, %v830, 0.0
      %v881 = vrot.slane %v880, 4
      %v882 = vadd.f32 %v880, %v881
      %v883 = vrot.slane %v882, 2
      %v884 = vadd.f32 %v882, %v883
      %v885 = vrot.slane %v884, 1
      %v886 = vadd.f32 %v884, %v885
      %887 = vset.pattern.permute.xlu0 2
      %888 = vperm.xlu0 %887, %v679
      %v889 = vpop.permute.xlu0 %888
      %891 = vset.pattern.permute.xlu0 2
      %892 = vperm.xlu0 %891, %v680
      %v893 = vpop.permute.xlu0 %892
      %895 = vset.pattern.permute.xlu0 2
      %896 = vperm.xlu0 %895, %v681
      %v897 = vpop.permute.xlu0 %896
      %899 = vset.pattern.permute.xlu0 2
      %900 = vperm.xlu0 %899, %v682
      %v901 = vpop.permute.xlu0 %900
      %903 = vset.pattern.permute.xlu0 2
      %904 = vperm.xlu0 %903, %v683
      %v905 = vpop.permute.xlu0 %904
      %907 = vset.pattern.permute.xlu0 2
      %908 = vperm.xlu0 %907, %v684
      %v909 = vpop.permute.xlu0 %908
      %911 = vset.pattern.permute.xlu0 2
      %912 = vperm.xlu0 %911, %v685
      %v913 = vpop.permute.xlu0 %912
      %915 = vset.pattern.permute.xlu0 2
      %916 = vperm.xlu0 %915, %v686
      %v917 = vpop.permute.xlu0 %916
      %v919 = vmul.f32 %v889, %v215
      %v920 = vmul.f32 %v893, %v216
      %v921 = vmul.f32 %v897, %v217
      %v922 = vmul.f32 %v901, %v218
      %v923 = vmul.f32 %v905, %v219
      %v924 = vmul.f32 %v909, %v220
      %v925 = vmul.f32 %v913, %v221
      %v926 = vmul.f32 %v917, %v222
      %v927 = vsel %vm227, %v919, 0.0
      %v928 = vrot.slane %v927, 4
      %v929 = vadd.f32 %v927, %v928
      %v930 = vrot.slane %v929, 2
      %v931 = vadd.f32 %v929, %v930
      %v932 = vrot.slane %v931, 1
      %v933 = vadd.f32 %v931, %v932
      %v934 = vsel %vm227, %v920, 0.0
      %v935 = vrot.slane %v934, 4
      %v936 = vadd.f32 %v934, %v935
      %v937 = vrot.slane %v936, 2
      %v938 = vadd.f32 %v936, %v937
      %v939 = vrot.slane %v938, 1
      %v940 = vadd.f32 %v938, %v939
      %v941 = vsel %vm227, %v921, 0.0
      %v942 = vrot.slane %v941, 4
      %v943 = vadd.f32 %v941, %v942
      %v944 = vrot.slane %v943, 2
      %v945 = vadd.f32 %v943, %v944
      %v946 = vrot.slane %v945, 1
      %v947 = vadd.f32 %v945, %v946
      %v948 = vsel %vm227, %v922, 0.0
      %v949 = vrot.slane %v948, 4
      %v950 = vadd.f32 %v948, %v949
      %v951 = vrot.slane %v950, 2
      %v952 = vadd.f32 %v950, %v951
      %v953 = vrot.slane %v952, 1
      %v954 = vadd.f32 %v952, %v953
      %v955 = vsel %vm227, %v923, 0.0
      %v956 = vrot.slane %v955, 4
      %v957 = vadd.f32 %v955, %v956
      %v958 = vrot.slane %v957, 2
      %v959 = vadd.f32 %v957, %v958
      %v960 = vrot.slane %v959, 1
      %v961 = vadd.f32 %v959, %v960
      %v962 = vsel %vm227, %v924, 0.0
      %v963 = vrot.slane %v962, 4
      %v964 = vadd.f32 %v962, %v963
      %v965 = vrot.slane %v964, 2
      %v966 = vadd.f32 %v964, %v965
      %v967 = vrot.slane %v966, 1
      %v968 = vadd.f32 %v966, %v967
      %v969 = vsel %vm227, %v925, 0.0
      %v970 = vrot.slane %v969, 4
      %v971 = vadd.f32 %v969, %v970
      %v972 = vrot.slane %v971, 2
      %v973 = vadd.f32 %v971, %v972
      %v974 = vrot.slane %v973, 1
      %v975 = vadd.f32 %v973, %v974
      %v976 = vsel %vm227, %v926, 0.0
      %v977 = vrot.slane %v976, 4
      %v978 = vadd.f32 %v976, %v977
      %v979 = vrot.slane %v978, 2
      %v980 = vadd.f32 %v978, %v979
      %v981 = vrot.slane %v980, 1
      %v982 = vadd.f32 %v980, %v981
      %983 = vset.pattern.permute.xlu0 3
      %984 = vperm.xlu0 %983, %v679
      %v985 = vpop.permute.xlu0 %984
      %987 = vset.pattern.permute.xlu0 3
      %988 = vperm.xlu0 %987, %v680
      %v989 = vpop.permute.xlu0 %988
      %991 = vset.pattern.permute.xlu0 3
      %992 = vperm.xlu0 %991, %v681
      %v993 = vpop.permute.xlu0 %992
      %995 = vset.pattern.permute.xlu0 3
      %996 = vperm.xlu0 %995, %v682
      %v997 = vpop.permute.xlu0 %996
      %999 = vset.pattern.permute.xlu0 3
      %1000 = vperm.xlu0 %999, %v683
      %v1001 = vpop.permute.xlu0 %1000
      %1003 = vset.pattern.permute.xlu0 3
      %1004 = vperm.xlu0 %1003, %v684
      %v1005 = vpop.permute.xlu0 %1004
      %1007 = vset.pattern.permute.xlu0 3
      %1008 = vperm.xlu0 %1007, %v685
      %v1009 = vpop.permute.xlu0 %1008
      %1011 = vset.pattern.permute.xlu0 3
      %1012 = vperm.xlu0 %1011, %v686
      %v1013 = vpop.permute.xlu0 %1012
      %v1015 = vmul.f32 %v985, %v215
      %v1016 = vmul.f32 %v989, %v216
      %v1017 = vmul.f32 %v993, %v217
      %v1018 = vmul.f32 %v997, %v218
      %v1019 = vmul.f32 %v1001, %v219
      %v1020 = vmul.f32 %v1005, %v220
      %v1021 = vmul.f32 %v1009, %v221
      %v1022 = vmul.f32 %v1013, %v222
      %v1023 = vsel %vm227, %v1015, 0.0
      %v1024 = vrot.slane %v1023, 4
      %v1025 = vadd.f32 %v1023, %v1024
      %v1026 = vrot.slane %v1025, 2
      %v1027 = vadd.f32 %v1025, %v1026
      %v1028 = vrot.slane %v1027, 1
      %v1029 = vadd.f32 %v1027, %v1028
      %v1030 = vsel %vm227, %v1016, 0.0
      %v1031 = vrot.slane %v1030, 4
      %v1032 = vadd.f32 %v1030, %v1031
      %v1033 = vrot.slane %v1032, 2
      %v1034 = vadd.f32 %v1032, %v1033
      %v1035 = vrot.slane %v1034, 1
      %v1036 = vadd.f32 %v1034, %v1035
      %v1037 = vsel %vm227, %v1017, 0.0
      %v1038 = vrot.slane %v1037, 4
      %v1039 = vadd.f32 %v1037, %v1038
      %v1040 = vrot.slane %v1039, 2
      %v1041 = vadd.f32 %v1039, %v1040
      %v1042 = vrot.slane %v1041, 1
      %v1043 = vadd.f32 %v1041, %v1042
      %v1044 = vsel %vm227, %v1018, 0.0
      %v1045 = vrot.slane %v1044, 4
      %v1046 = vadd.f32 %v1044, %v1045
      %v1047 = vrot.slane %v1046, 2
      %v1048 = vadd.f32 %v1046, %v1047
      %v1049 = vrot.slane %v1048, 1
      %v1050 = vadd.f32 %v1048, %v1049
      %v1051 = vsel %vm227, %v1019, 0.0
      %v1052 = vrot.slane %v1051, 4
      %v1053 = vadd.f32 %v1051, %v1052
      %v1054 = vrot.slane %v1053, 2
      %v1055 = vadd.f32 %v1053, %v1054
      %v1056 = vrot.slane %v1055, 1
      %v1057 = vadd.f32 %v1055, %v1056
      %v1058 = vsel %vm227, %v1020, 0.0
      %v1059 = vrot.slane %v1058, 4
      %v1060 = vadd.f32 %v1058, %v1059
      %v1061 = vrot.slane %v1060, 2
      %v1062 = vadd.f32 %v1060, %v1061
      %v1063 = vrot.slane %v1062, 1
      %v1064 = vadd.f32 %v1062, %v1063
      %v1065 = vsel %vm227, %v1021, 0.0
      %v1066 = vrot.slane %v1065, 4
      %v1067 = vadd.f32 %v1065, %v1066
      %v1068 = vrot.slane %v1067, 2
      %v1069 = vadd.f32 %v1067, %v1068
      %v1070 = vrot.slane %v1069, 1
      %v1071 = vadd.f32 %v1069, %v1070
      %v1072 = vsel %vm227, %v1022, 0.0
      %v1073 = vrot.slane %v1072, 4
      %v1074 = vadd.f32 %v1072, %v1073
      %v1075 = vrot.slane %v1074, 2
      %v1076 = vadd.f32 %v1074, %v1075
      %v1077 = vrot.slane %v1076, 1
      %v1078 = vadd.f32 %v1076, %v1077
      %vm1087 = vcmask 1041409
      %v1088 = vsel %vm1087, %v748, %v741
      %vm1089 = vcmask 1042434
      %v1090 = vsel %vm1089, %v755, %v1088
      %vm1091 = vcmask 1043459
      %v1092 = vsel %vm1091, %v762, %v1090
      %vm1093 = vcmask 1044484
      %v1094 = vsel %vm1093, %v769, %v1092
      %vm1095 = vcmask 1045509
      %v1096 = vsel %vm1095, %v776, %v1094
      %vm1097 = vcmask 1046534
      %v1098 = vsel %vm1097, %v783, %v1096
      %vm1099 = vcmask 1047559
      %v1100 = vsel %vm1099, %v790, %v1098
      %v1110 = vsel %vm1087, %v844, %v837
      %v1111 = vsel %vm1089, %v851, %v1110
      %v1112 = vsel %vm1091, %v858, %v1111
      %v1113 = vsel %vm1093, %v865, %v1112
      %v1114 = vsel %vm1095, %v872, %v1113
      %v1115 = vsel %vm1097, %v879, %v1114
      %v1116 = vsel %vm1099, %v886, %v1115
      %1117 = vrot.lane.b32.xlu0 %v1116, 32
      %v1118 = vpop.permute.xlu0 %1117
      %v1128 = vsel %vm1087, %v940, %v933
      %v1129 = vsel %vm1089, %v947, %v1128
      %v1130 = vsel %vm1091, %v954, %v1129
      %v1131 = vsel %vm1093, %v961, %v1130
      %v1132 = vsel %vm1095, %v968, %v1131
      %v1133 = vsel %vm1097, %v975, %v1132
      %v1134 = vsel %vm1099, %v982, %v1133
      %1135 = vrot.lane.b32.xlu0 %v1134, 64
      %v1136 = vpop.permute.xlu0 %1135
      %v1146 = vsel %vm1087, %v1036, %v1029
      %v1147 = vsel %vm1089, %v1043, %v1146
      %v1148 = vsel %vm1091, %v1050, %v1147
      %v1149 = vsel %vm1093, %v1057, %v1148
      %v1150 = vsel %vm1095, %v1064, %v1149
      %v1151 = vsel %vm1097, %v1071, %v1150
      %v1152 = vsel %vm1099, %v1078, %v1151
      %1153 = vrot.lane.b32.xlu0 %v1152, 96
      %v1154 = vpop.permute.xlu0 %1153
      %v1156 = vsel %vm227, %v1100, %v1118
      %vm1157 = vcmask 523264
      %v1158 = vsel %vm1157, %v1156, %v1136
      %vm1159 = vcmask 785408
      %v1160 = vsel %vm1159, %v1158, %v1154
      %1161 = vst [vmem:[%s214] sm:$0xff] %v1160
      %p1162 = scmp.lt.s32.totalorder %s15, 1
      %s1163 = scalar_select %p1162, %s15, 1
      %s1164 = smul.addr %s1163, 8
      %s1165 = scalar_lea.vmem %s4, %s1164
      // Predicated region
      $region37: #{multi_interest_self_attention.1} parent=35 // pred_check
        %p1166 = pneg %p127
      $region38: #{multi_interest_self_attention.1} parent=35 // pred_check_branch
        %1168 = sbr.rel (%p1166) target = $region40
      $region39: #{multi_interest_self_attention.1} parent=35 // pred_region
        _
      $region40: #{multi_interest_self_attention.1} parent=35 // pred_fallthru
        _
    $region36: #{multi_interest_self_attention.1} parent=5 // pred_fallthru
      _
    %p1169 = scmp.le.s32.totalorder 2, %s10
    // Predicated region
    $region41: #{multi_interest_self_attention.1} parent=5 // pred_check
      %p1170 = pneg %p1169
    $region42: #{multi_interest_self_attention.1} parent=5 // pred_check_branch
      %1172 = sbr.rel (%p1170) target = $region44
    $region43: #{multi_interest_self_attention.1} parent=5 // pred_region
      %s1173 = ssub.s32 %s10, 2
      // Predicated region
      $region45: #{multi_interest_self_attention.1} parent=43 // pred_check
        %p1174 = pneg %p133
      $region46: #{multi_interest_self_attention.1} parent=43 // pred_check_branch
        %1176 = sbr.rel (%p1174) target = $region48
      $region47: #{multi_interest_self_attention.1} parent=43 // pred_region
        %p1177 = scmp.lt.s32.totalorder %s16, 1
        %s1178 = scalar_select %p1177, %s16, 1
        %s1179 = smul.addr %s1178, 8
        %s1180 = scalar_lea.vmem %s4, %s1179
      $region48: #{multi_interest_self_attention.1} parent=43 // pred_fallthru
        _
    $region44: #{multi_interest_self_attention.1} parent=5 // pred_fallthru
      _
  $region6: #{multi_interest_self_attention.1} parent=0 // loop_footer
    %s14 = sadd.s32 1, %s10
  $region7: #{multi_interest_self_attention.1} parent=0 // loop_footer_branch
    %9 = sbr.rel target = $region3
  $region8: #{multi_interest_self_attention.1} parent=0 // loop_exit
    _

</llo_original>
